<compile_context>
chip_gen: v5e
topology: v5e:2x2
jax: 0.10.0
libtpu: 0.0.40
codegen_flags: <defaults>
</compile_context>

<pallas_src>
import functools

import jax
import jax.numpy as jnp
from jax.experimental import pallas as pl
from jax.experimental.pallas import tpu as pltpu


HIDDEN = 50          # module's hidden width
HIDDEN_PAD = 64      # zero-padded hidden width (sublane/lane friendly)
OUT_PAD = 128        # lane-dense padded output width (adv in 0:A, value in lane A, rest 0)
ROW_PACK = 16        # bf16 sublane pack: rows per vreg


def _dueling_qnet_kernel(
    actual_b,              # static: number of real (unpadded) batch rows
    action_size,           # static: A
    x_ref,                 # [B_pad, S]            bf16
    ws_ref, bs_ref,        # [S, 64] bf16,         [1, 64]   f32   (shared)
    w1_ref, b1_ref,        # [64, 128] bf16,       [1, 128]  f32   (advantage1 | value1)
    w2_ref, b2_ref,        # [128, 128] bf16,      [1, 128]  f32   (block-diag adv2 / val2, lane-dense)
    out_ref,               # [B_pad, 128]          f32   (lanes 0:A hold val + adv - max)
):
    # shared layer + ReLU (MXU matmul #1, f32 accumulate)
    h = jnp.dot(x_ref[...], ws_ref[...], preferred_element_type=jnp.float32)
    h = jnp.maximum(h + bs_ref[...], 0.0).astype(jnp.bfloat16)            # [B, 64]

    # fused advantage1|value1 + ReLU (MXU matmul #2)
    h1 = jnp.dot(h, w1_ref[...], preferred_element_type=jnp.float32)
    h1 = jnp.maximum(h1 + b1_ref[...], 0.0).astype(jnp.bfloat16)          # [B, 128]

    # fused block-diagonal advantage2/value2 + ReLU (MXU matmul #3)
    h2 = jnp.dot(h1, w2_ref[...], preferred_element_type=jnp.float32)
    h2 = jnp.maximum(h2 + b2_ref[...], 0.0)                               # [B, 128] f32
    # layout: lanes 0:A = advantage2, lane A = value2, lanes A+1: = 0 (zero-padded weights)

    lane = jax.lax.broadcasted_iota(jnp.int32, h2.shape, 1)
    row = jax.lax.broadcasted_iota(jnp.int32, h2.shape, 0)

    # Global adv max over REAL rows and the first A lanes only (matches torch adv.max()).
    adv_valid = (lane < action_size) & (row < actual_b)
    adv_max = jnp.max(jnp.where(adv_valid, h2, -jnp.inf))                 # scalar

    # Per-row value (lane A) extracted with a masked row-sum — no sub-vreg slices.
    val_row = jnp.sum(jnp.where(lane == action_size, h2, 0.0),
                      axis=1, keepdims=True)                              # [B, 1]

    # Lanes 0:A hold val + (adv - max); other lanes are garbage and sliced off in the wrapper.
    out_ref[...] = (h2 - adv_max + val_row).astype(out_ref.dtype)


@functools.partial(jax.jit, static_argnums=(2,))
def dueling_qnet_forward(state, fused, action_size):
    """state: [B, state_size] float32.  fused: dict from fuse_params().  Returns [B, A] f32."""
    B = state.shape[0]
    B_pad = max(ROW_PACK, ((B + ROW_PACK - 1) // ROW_PACK) * ROW_PACK)

    x = state.astype(jnp.bfloat16)
    if B_pad != B:
        x = jnp.pad(x, ((0, B_pad - B), (0, 0)))

    args = (
        x,
        fused["ws"], fused["bs"],
        fused["w1"], fused["b1"],
        fused["w2"], fused["b2"],
    )
    vmem_spec = pl.BlockSpec(memory_space=pltpu.MemorySpace.VMEM)

    out = pl.pallas_call(
        functools.partial(_dueling_qnet_kernel, B, action_size),
        out_shape=jax.ShapeDtypeStruct((B_pad, OUT_PAD), jnp.float32),
        in_specs=[vmem_spec] * len(args),
        out_specs=pl.BlockSpec(memory_space=pltpu.MemorySpace.VMEM),
    )(*args)

    return out[:B, :action_size]


def init_params(key, state_size, action_size, hidden=HIDDEN):
    """Deterministic init mimicking torch.nn.Linear default (uniform +-1/sqrt(fan_in)).
    Weights stored as [in_features, out_features] (transpose of PyTorch)."""
    def linear(k, fan_in, fan_out):
        kw, kb = jax.random.split(k)
        bound = 1.0 / jnp.sqrt(jnp.float32(fan_in))
        w = jax.random.uniform(kw, (fan_in, fan_out), jnp.float32, -bound, bound)
        b = jax.random.uniform(kb, (1, fan_out), jnp.float32, -bound, bound)
        return w, b

    keys = jax.random.split(key, 5)
    ws, bs = linear(keys[0], state_size, hidden)
    wa1, ba1 = linear(keys[1], hidden, hidden)
    wa2, ba2 = linear(keys[2], hidden, action_size)
    wv1, bv1 = linear(keys[3], hidden, hidden)
    wv2, bv2 = linear(keys[4], hidden, 1)
    return dict(ws=ws, bs=bs, wa1=wa1, ba1=ba1, wa2=wa2, ba2=ba2,
                wv1=wv1, bv1=bv1, wv2=wv2, bv2=bv2)


def fuse_params(p, state_size, action_size, hidden=HIDDEN, hpad=HIDDEN_PAD, opad=OUT_PAD):
    """One-time fusion + padding + bf16 cast of the 5 Linear layers into 3 matmul operands.

    Layout of the fused activations: h1 = [advantage1 (hpad) | value1 (hpad)].
    Layer-2 weight is block-diagonal so adv/val stay independent, and lane-dense (opad cols):
        rows   0:hidden,       cols 0:A  -> advantage2
        rows hpad:hpad+hidden, col  A    -> value2
        cols A+1:opad                    -> zero padding (ReLU(0) = 0, never affects results)
    """
    H, HP, A = hidden, hpad, action_size
    assert A + 1 <= opad

    ws = jnp.zeros((state_size, HP), jnp.float32).at[:, :H].set(p["ws"])
    bs = jnp.zeros((1, HP), jnp.float32).at[:, :H].set(p["bs"])

    w1 = jnp.zeros((HP, 2 * HP), jnp.float32)
    w1 = w1.at[:H, :H].set(p["wa1"]).at[:H, HP:HP + H].set(p["wv1"])
    b1 = jnp.zeros((1, 2 * HP), jnp.float32)
    b1 = b1.at[:, :H].set(p["ba1"]).at[:, HP:HP + H].set(p["bv1"])

    w2 = jnp.zeros((2 * HP, opad), jnp.float32)
    w2 = w2.at[:H, :A].set(p["wa2"]).at[HP:HP + H, A:A + 1].set(p["wv2"])
    b2 = jnp.zeros((1, opad), jnp.float32)
    b2 = b2.at[:, :A].set(p["ba2"]).at[:, A:A + 1].set(p["bv2"])

    return dict(
        ws=ws.astype(jnp.bfloat16), bs=bs,
        w1=w1.astype(jnp.bfloat16), b1=b1,
        w2=w2.astype(jnp.bfloat16), b2=b2,
    )


def reference_forward(state, p):
    """Pure-JAX f32 reference of the PyTorch forward for verification."""
    x = jnp.maximum(state @ p["ws"] + p["bs"], 0.0)
    adv = jnp.maximum(x @ p["wa1"] + p["ba1"], 0.0)
    adv = jnp.maximum(adv @ p["wa2"] + p["ba2"], 0.0)
    val = jnp.maximum(x @ p["wv1"] + p["bv1"], 0.0)
    val = jnp.maximum(val @ p["wv2"] + p["bv2"], 0.0)
    adv = adv - jnp.max(adv)
    return val + adv


if __name__ == "__main__":
    STATE_SIZE = 8      # Banana-env style small state
    ACTION_SIZE = 4

    key = jax.random.PRNGKey(0)
    k_params, k_state_a, k_state_b = jax.random.split(key, 3)

    raw_params = init_params(k_params, STATE_SIZE, ACTION_SIZE)
    fused_params = fuse_params(raw_params, STATE_SIZE, ACTION_SIZE)

    # Case 1: replay-batch sized call (amortizes MXU fill / launch overhead).
    state_big = jax.random.normal(k_state_a, (64, STATE_SIZE), jnp.float32)
    out_big = jax.block_until_ready(
        dueling_qnet_forward(state_big, fused_params, ACTION_SIZE))
    ref_big = reference_forward(state_big, raw_params)
    assert out_big.shape == (64, ACTION_SIZE)
    assert jnp.allclose(out_big, ref_big, atol=5e-2, rtol=5e-2), (out_big, ref_big)

    # Case 2: tiny per-env-step batch (exercises the row-padding + row-masked global max).
    state_small = jax.random.normal(k_state_b, (2, STATE_SIZE), jnp.float32)
    out_small = jax.block_until_ready(
        dueling_qnet_forward(state_small, fused_params, ACTION_SIZE))
    ref_small = reference_forward(state_small, raw_params)
    assert out_small.shape == (2, ACTION_SIZE)
    assert jnp.allclose(out_small, ref_small, atol=5e-2, rtol=5e-2), (out_small, ref_small)

    print("KERNEL_OK")
</pallas_src>

<mosaic_0001>
module attributes {stable_mosaic.version = 11 : i64} {
  func.func @_dueling_qnet_kernel(%arg0: memref<64x8xbf16, #tpu.memory_space<vmem>>, %arg1: memref<8x64xbf16, #tpu.memory_space<vmem>>, %arg2: memref<1x64xf32, #tpu.memory_space<vmem>>, %arg3: memref<64x128xbf16, #tpu.memory_space<vmem>>, %arg4: memref<1x128xf32, #tpu.memory_space<vmem>>, %arg5: memref<128x128xbf16, #tpu.memory_space<vmem>>, %arg6: memref<1x128xf32, #tpu.memory_space<vmem>>, %arg7: memref<64x128xf32, #tpu.memory_space<vmem>>) attributes {dimension_semantics = [], scalar_prefetch = 0 : i64, scratch_operands = 0 : i64, tpu.core_type = #tpu.core_type<tc>} {
    %c0 = arith.constant 0 : index
    %c0_0 = arith.constant 0 : index
    %0 = vector.load %arg0[%c0, %c0_0] : memref<64x8xbf16, #tpu.memory_space<vmem>>, vector<64x8xbf16>
    %c0_1 = arith.constant 0 : index
    %c0_2 = arith.constant 0 : index
    %1 = vector.load %arg1[%c0_1, %c0_2] : memref<8x64xbf16, #tpu.memory_space<vmem>>, vector<8x64xbf16>
    %cst = arith.constant dense<0.000000e+00> : vector<64x64xf32>
    %2 = tpu.matmul %0, %1, %cst {dimension_numbers = #tpu.dot_dimension_numbers<[1], [0], [0], [1], [0, 0, 1, 1], [], []>} : vector<64x8xbf16>, vector<8x64xbf16>, vector<64x64xf32> -> vector<64x64xf32>
    %c0_3 = arith.constant 0 : index
    %c0_4 = arith.constant 0 : index
    %3 = vector.load %arg2[%c0_3, %c0_4] : memref<1x64xf32, #tpu.memory_space<vmem>>, vector<1x64xf32>
    %4 = vector.broadcast %3 : vector<1x64xf32> to vector<64x64xf32>
    %5 = arith.addf %2, %4 : vector<64x64xf32>
    %cst_5 = arith.constant 0.000000e+00 : f32
    %6 = vector.broadcast %cst_5 : f32 to vector<64x64xf32>
    %7 = arith.maximumf %5, %6 : vector<64x64xf32>
    %8 = arith.truncf %7 : vector<64x64xf32> to vector<64x64xbf16>
    %c0_6 = arith.constant 0 : index
    %c0_7 = arith.constant 0 : index
    %9 = vector.load %arg3[%c0_6, %c0_7] : memref<64x128xbf16, #tpu.memory_space<vmem>>, vector<64x128xbf16>
    %cst_8 = arith.constant dense<0.000000e+00> : vector<64x128xf32>
    %10 = tpu.matmul %8, %9, %cst_8 {dimension_numbers = #tpu.dot_dimension_numbers<[1], [0], [0], [1], [0, 0, 1, 1], [], []>} : vector<64x64xbf16>, vector<64x128xbf16>, vector<64x128xf32> -> vector<64x128xf32>
    %c0_9 = arith.constant 0 : index
    %c0_10 = arith.constant 0 : index
    %11 = vector.load %arg4[%c0_9, %c0_10] : memref<1x128xf32, #tpu.memory_space<vmem>>, vector<1x128xf32>
    %12 = vector.broadcast %11 : vector<1x128xf32> to vector<64x128xf32>
    %13 = arith.addf %10, %12 : vector<64x128xf32>
    %cst_11 = arith.constant 0.000000e+00 : f32
    %14 = vector.broadcast %cst_11 : f32 to vector<64x128xf32>
    %15 = arith.maximumf %13, %14 : vector<64x128xf32>
    %16 = arith.truncf %15 : vector<64x128xf32> to vector<64x128xbf16>
    %c0_12 = arith.constant 0 : index
    %c0_13 = arith.constant 0 : index
    %17 = vector.load %arg5[%c0_12, %c0_13] : memref<128x128xbf16, #tpu.memory_space<vmem>>, vector<128x128xbf16>
    %cst_14 = arith.constant dense<0.000000e+00> : vector<64x128xf32>
    %18 = tpu.matmul %16, %17, %cst_14 {dimension_numbers = #tpu.dot_dimension_numbers<[1], [0], [0], [1], [0, 0, 1, 1], [], []>} : vector<64x128xbf16>, vector<128x128xbf16>, vector<64x128xf32> -> vector<64x128xf32>
    %c0_15 = arith.constant 0 : index
    %c0_16 = arith.constant 0 : index
    %19 = vector.load %arg6[%c0_15, %c0_16] : memref<1x128xf32, #tpu.memory_space<vmem>>, vector<1x128xf32>
    %20 = vector.broadcast %19 : vector<1x128xf32> to vector<64x128xf32>
    %21 = arith.addf %18, %20 : vector<64x128xf32>
    %cst_17 = arith.constant 0.000000e+00 : f32
    %22 = vector.broadcast %cst_17 : f32 to vector<64x128xf32>
    %23 = arith.maximumf %21, %22 : vector<64x128xf32>
    %24 = tpu.iota {dimensions = array<i32: 1>} : vector<64x128xi32>
    %25 = tpu.iota {dimensions = array<i32: 0>} : vector<64x128xi32>
    %c4_i32 = arith.constant 4 : i32
    %26 = vector.broadcast %c4_i32 : i32 to vector<64x128xi32>
    %27 = arith.cmpi slt, %24, %26 : vector<64x128xi32>
    %c64_i32 = arith.constant 64 : i32
    %28 = vector.broadcast %c64_i32 : i32 to vector<64x128xi32>
    %29 = arith.cmpi slt, %25, %28 : vector<64x128xi32>
    %30 = arith.andi %27, %29 : vector<64x128xi1>
    %cst_18 = arith.constant 0xFF800000 : f32
    %31 = vector.broadcast %cst_18 : f32 to vector<64x128xf32>
    %32 = arith.select %30, %23, %31 : vector<64x128xi1>, vector<64x128xf32>
    %33 = vector.shape_cast %32 : vector<64x128xf32> to vector<1x64x128xf32>
    %cst_19 = arith.constant dense<0xFF800000> : vector<1xf32>
    %34 = vector.multi_reduction <maximumf>, %33, %cst_19 [1, 2] : vector<1x64x128xf32> to vector<1xf32>
    %35 = vector.shape_cast %34 : vector<1xf32> to vector<1x1x1xf32>
    %36 = vector.extract %35[0, 0, 0] : f32 from vector<1x1x1xf32>
    %c4_i32_20 = arith.constant 4 : i32
    %37 = vector.broadcast %c4_i32_20 : i32 to vector<64x128xi32>
    %38 = arith.cmpi eq, %24, %37 : vector<64x128xi32>
    %cst_21 = arith.constant 0.000000e+00 : f32
    %39 = vector.broadcast %cst_21 : f32 to vector<64x128xf32>
    %40 = arith.select %38, %23, %39 : vector<64x128xi1>, vector<64x128xf32>
    %cst_22 = arith.constant dense<0.000000e+00> : vector<64xf32>
    %41 = vector.multi_reduction <add>, %40, %cst_22 [1] : vector<64x128xf32> to vector<64xf32>
    %42 = vector.shape_cast %41 : vector<64xf32> to vector<64x1xf32>
    %43 = vector.broadcast %36 : f32 to vector<64x128xf32>
    %44 = arith.subf %23, %43 : vector<64x128xf32>
    %45 = vector.broadcast %42 : vector<64x1xf32> to vector<64x128xf32>
    %46 = arith.addf %44, %45 : vector<64x128xf32>
    %c0_23 = arith.constant 0 : index
    %c0_24 = arith.constant 0 : index
    %47 = vector.load %arg7[%c0_23, %c0_24] : memref<64x128xf32, #tpu.memory_space<vmem>>, vector<64x128xf32>
    tpu.vector_store %arg7[%c0_23, %c0_24], %46 {strides = array<i32>} : memref<64x128xf32, #tpu.memory_space<vmem>>, vector<64x128xf32>,
    return
  }
}

</mosaic_0001>

<llo_original>
// kernel: dueling_qnet_forward.1
$region0: #{dueling_qnet_forward.1}
  #allocation0 [shape = 'u32[]', space=smem, size = 0x4, offset = 0x4, fixed_abs, tag = 'smem constant byte address 0x4 - core index']
  #allocation1 [shape = 'u32[72,128]{1,0:T(1,128)}', space=vmem, size = 0x9000, scoped, tag = 'internal scratch']
  %s0 = inlined_call_operand.vmem [shape: bf16[64,8], index: 0, kind: input, shape index: {}]
  %s1 = inlined_call_operand.vmem [shape: bf16[8,64], index: 1, kind: input, shape index: {}]
  %s2 = inlined_call_operand.vmem [shape: f32[1,64], index: 2, kind: input, shape index: {}]
  %s3 = inlined_call_operand.vmem [shape: bf16[64,128], index: 3, kind: input, shape index: {}]
  %s4 = inlined_call_operand.vmem [shape: f32[1,128], index: 4, kind: input, shape index: {}]
  %s5 = inlined_call_operand.hbm [shape: bf16[128,128], index: 5, kind: input, shape index: {}]
  %s6 = inlined_call_operand.vmem [shape: f32[1,128], index: 6, kind: input, shape index: {}]
  %s7 = inlined_call_operand.vmem [shape: f32[64,128], index: 7, kind: output, shape index: {}]
  %s8 = sld [smem:[#allocation0]]
  $region42: #{dueling_qnet_forward.1} parent=0
    _
  %s10 = ssub.s32 1, %s8
  %s11 = scalar_select 0, %s10, %s8
  $region1: #{dueling_qnet_forward.1} parent=0
    #allocation2 [shape = 'u8[32768]{0}', space=vmem, size = 0x8000, scoped, tag = 'input window, operand 5, single buffered']
    #allocation3 [shape = 's32[1]{0}', space=sflag, size = 0x4, scoped, tag = 'scoped memory for dueling_qnet_forward.1']
    %12 = vsyncpa [#allocation3], 0
    // Predicated region
    $region2: #{dueling_qnet_forward.1} parent=1 // pred_check
      _
    $region3: #{dueling_qnet_forward.1} parent=1 // pred_check_branch
      %14 = sbr.rel (0) target = $region5
    $region4: #{dueling_qnet_forward.1} parent=1 // pred_region
      _
    $region5: #{dueling_qnet_forward.1} parent=1 // pred_fallthru
      _
    // Predicated region
    $region6: #{dueling_qnet_forward.1} parent=1 // pred_check
      _
    $region7: #{dueling_qnet_forward.1} parent=1 // pred_check_branch
      %16 = sbr.rel (0) target = $region9
    $region8: #{dueling_qnet_forward.1} parent=1 // pred_region
      _
    $region9: #{dueling_qnet_forward.1} parent=1 // pred_fallthru
      _
    // Predicated region
    $region10: #{dueling_qnet_forward.1} parent=1 // pred_check
      _
    $region11: #{dueling_qnet_forward.1} parent=1 // pred_check_branch
      %18 = sbr.rel (0) target = $region13
    $region12: #{dueling_qnet_forward.1} parent=1 // pred_region
      _
    $region13: #{dueling_qnet_forward.1} parent=1 // pred_fallthru
      _
    // Predicated region
    $region14: #{dueling_qnet_forward.1} parent=1 // pred_check
      _
    $region15: #{dueling_qnet_forward.1} parent=1 // pred_check_branch
      %20 = sbr.rel (0) target = $region17
    $region16: #{dueling_qnet_forward.1} parent=1 // pred_region
      _
    $region17: #{dueling_qnet_forward.1} parent=1 // pred_fallthru
      _
    // Predicated region
    $region18: #{dueling_qnet_forward.1} parent=1 // pred_check
      _
    $region19: #{dueling_qnet_forward.1} parent=1 // pred_check_branch
      %22 = sbr.rel (0) target = $region21
    $region20: #{dueling_qnet_forward.1} parent=1 // pred_region
      _
    $region21: #{dueling_qnet_forward.1} parent=1 // pred_fallthru
      _
    // Predicated region
    $region22: #{dueling_qnet_forward.1} parent=1 // pred_check
      _
    $region23: #{dueling_qnet_forward.1} parent=1 // pred_check_branch
      %24 = sbr.rel (0) target = $region25
    $region24: #{dueling_qnet_forward.1} parent=1 // pred_region
      %26 = vsyncadd [#allocation3], 0
      %s27 = sshll.u32 %s5, 4
      %s28 = int_to_ptr.hbm [resolvable:$true] %s27
      %s29 = sshll.u32 [#allocation2], 4
      %s30 = int_to_ptr.vmem [resolvable:$true] %s29
      %35 = dma.hbm_to_vmem [thread:$0]  %s28, 1024, %s30, [#allocation3], 64, 64, 4
    $region25: #{dueling_qnet_forward.1} parent=1 // pred_fallthru
      _
    // Predicated region
    $region26: #{dueling_qnet_forward.1} parent=1 // pred_check
      _
    $region27: #{dueling_qnet_forward.1} parent=1 // pred_check_branch
      %37 = sbr.rel (0) target = $region29
    $region28: #{dueling_qnet_forward.1} parent=1 // pred_region
      _
    $region29: #{dueling_qnet_forward.1} parent=1 // pred_fallthru
      _
    // Predicated region
    $region30: #{dueling_qnet_forward.1} parent=1 // pred_check
      _
    $region31: #{dueling_qnet_forward.1} parent=1 // pred_check_branch
      %39 = sbr.rel (0) target = $region33
    $region32: #{dueling_qnet_forward.1} parent=1 // pred_region
      %41 = dma.done [#allocation3], 1024
    $region33: #{dueling_qnet_forward.1} parent=1 // pred_fallthru
      _
    %v43 = vld [vmem:[%s0] sm:$0xf]
    %v44 = vld [vmem:[%s0 + $0x4] sm:$0xf]
    %v45 = vld [vmem:[%s0 + $0x8] sm:$0xf]
    %v46 = vld [vmem:[%s0 + $0xc] sm:$0xf]
    %v47 = vld [vmem:[%s0 + $0x10] sm:$0xf]
    %v48 = vld [vmem:[%s0 + $0x14] sm:$0xf]
    %v49 = vld [vmem:[%s0 + $0x18] sm:$0xf]
    %v50 = vld [vmem:[%s0 + $0x1c] sm:$0xf]
    %v51 = vld [vmem:[%s1] sm:$0xf]
    %v52 = vld [vmem:[%s2] sm:$0x1]
    %v54 = vperm.slane %v52, 0
    %v64 = vunpack.c.l.b16 %v43
    %v65 = vunpack.c.l.b16 %v44
    %v66 = vunpack.c.l.b16 %v45
    %v67 = vunpack.c.l.b16 %v46
    %v68 = vunpack.c.l.b16 %v47
    %v69 = vunpack.c.l.b16 %v48
    %v70 = vunpack.c.l.b16 %v49
    %v71 = vunpack.c.l.b16 %v50
    %v72 = vpack.c.b16 %v65, %v64
    %v73 = vpack.c.b16 %v67, %v66
    %v74 = vpack.c.b16 %v69, %v68
    %v75 = vpack.c.b16 %v71, %v70
    %vm76 = vcmask 64512
    %v78 = vsel %vm76, %v72, 0
    %v81 = vsel %vm76, %v73, 0
    %v84 = vsel %vm76, %v74, 0
    %v87 = vsel %vm76, %v75, 0
    %vm89 = vcmask 1043456
    %v91 = vsel %vm89, %v51, 0
    %93 = vmatpush.bf16.msra.mxu0 0
    %94 = vmatpush.bf16.msra.mxu0 0
    %95 = vmatpush.bf16.msra.mxu0 0
    %96 = vmatpush.bf16.msra.mxu0 0
    %97 = vmatpush.bf16.msra.mxu0 0
    %98 = vmatpush.bf16.msra.mxu0 0
    %99 = vmatpush.bf16.msra.mxu0 0
    %100 = vmatpush.bf16.msra.mxu0 %v91
    %101 = vmatmul.bf16.gmra.mxu0 %v78
    %v102 = vpop.f32.mrf.mxu0
    %v103 = vadd.f32 %v54, %v102
    %v104 = vpop.f32.mrf.mxu0
    %v105 = vadd.f32 %v54, %v104
    %106 = vmatmul.bf16.gmra.mxu0 %v81
    %v107 = vpop.f32.mrf.mxu0
    %v108 = vadd.f32 %v54, %v107
    %v109 = vpop.f32.mrf.mxu0
    %v110 = vadd.f32 %v54, %v109
    %111 = vmatmul.bf16.gmra.mxu0 %v84
    %v112 = vpop.f32.mrf.mxu0
    %v113 = vadd.f32 %v54, %v112
    %v114 = vpop.f32.mrf.mxu0
    %v115 = vadd.f32 %v54, %v114
    %116 = vmatmul.bf16.gmra.mxu0 %v87
    %v117 = vpop.f32.mrf.mxu0
    %v118 = vadd.f32 %v54, %v117
    %v119 = vpop.f32.mrf.mxu0
    %v120 = vadd.f32 %v54, %v119
    %121 = vdwg.mxu0
    %v122 = vmax.f32 %v103, 0.0
    %v123 = vmax.f32 %v105, 0.0
    %v124 = vmax.f32 %v108, 0.0
    %v125 = vmax.f32 %v110, 0.0
    %v126 = vmax.f32 %v113, 0.0
    %v127 = vmax.f32 %v115, 0.0
    %v128 = vmax.f32 %v118, 0.0
    %v129 = vmax.f32 %v120, 0.0
    %v130 = vpack.c.bf16 %v123, %v122
    %v131 = vpack.c.bf16 %v125, %v124
    %v132 = vpack.c.bf16 %v127, %v126
    %v133 = vpack.c.bf16 %v129, %v128
    %v134 = vld [vmem:[%s3] sm:$0xf]
    %v135 = vld [vmem:[%s3 + $0x4] sm:$0xf]
    %v136 = vld [vmem:[%s3 + $0x8] sm:$0xf]
    %v137 = vld [vmem:[%s3 + $0xc] sm:$0xf]
    %v138 = vld [vmem:[%s3 + $0x10] sm:$0xf]
    %v139 = vld [vmem:[%s3 + $0x14] sm:$0xf]
    %v140 = vld [vmem:[%s3 + $0x18] sm:$0xf]
    %v141 = vld [vmem:[%s3 + $0x1c] sm:$0xf]
    %v142 = vld [vmem:[%s4] sm:$0x1]
    %v144 = vperm.slane %v142, 0
    %v154 = vunpack.c.l.b16 %v134
    %v155 = vunpack.c.l.b16 %v135
    %v156 = vunpack.c.l.b16 %v136
    %v157 = vunpack.c.l.b16 %v137
    %v158 = vunpack.c.l.b16 %v138
    %v159 = vunpack.c.l.b16 %v139
    %v160 = vunpack.c.l.b16 %v140
    %v161 = vunpack.c.l.b16 %v141
    %v162 = vpack.c.b16 %v155, %v154
    %v163 = vpack.c.b16 %v157, %v156
    %v164 = vpack.c.b16 %v159, %v158
    %v165 = vpack.c.b16 %v161, %v160
    %vm170 = vcmask 523264
    %v172 = vsel %vm170, %v130, 0
    %v175 = vsel %vm170, %v131, 0
    %v178 = vsel %vm170, %v132, 0
    %v181 = vsel %vm170, %v133, 0
    %183 = vmatpush.bf16.msra.mxu0 0
    %184 = vmatpush.bf16.msra.mxu0 0
    %185 = vmatpush.bf16.msra.mxu0 0
    %186 = vmatpush.bf16.msra.mxu0 0
    %187 = vmatpush.bf16.msra.mxu0 %v165
    %188 = vmatpush.bf16.msra.mxu0 %v164
    %189 = vmatpush.bf16.msra.mxu0 %v163
    %190 = vmatpush.bf16.msra.mxu0 %v162
    %191 = vmatmul.bf16.gmra.mxu0 %v172
    %v192 = vpop.f32.mrf.mxu0
    %v193 = vadd.f32 %v144, %v192
    %v194 = vpop.f32.mrf.mxu0
    %v195 = vadd.f32 %v144, %v194
    %196 = vmatmul.bf16.gmra.mxu0 %v175
    %v197 = vpop.f32.mrf.mxu0
    %v198 = vadd.f32 %v144, %v197
    %v199 = vpop.f32.mrf.mxu0
    %v200 = vadd.f32 %v144, %v199
    %201 = vmatmul.bf16.gmra.mxu0 %v178
    %v202 = vpop.f32.mrf.mxu0
    %v203 = vadd.f32 %v144, %v202
    %v204 = vpop.f32.mrf.mxu0
    %v205 = vadd.f32 %v144, %v204
    %206 = vmatmul.bf16.gmra.mxu0 %v181
    %v207 = vpop.f32.mrf.mxu0
    %v208 = vadd.f32 %v144, %v207
    %v209 = vpop.f32.mrf.mxu0
    %v210 = vadd.f32 %v144, %v209
    %211 = vdwg.mxu0
    %v212 = vmax.f32 %v193, 0.0
    %v213 = vmax.f32 %v195, 0.0
    %v214 = vmax.f32 %v198, 0.0
    %v215 = vmax.f32 %v200, 0.0
    %v216 = vmax.f32 %v203, 0.0
    %v217 = vmax.f32 %v205, 0.0
    %v218 = vmax.f32 %v208, 0.0
    %v219 = vmax.f32 %v210, 0.0
    %v220 = vpack.c.bf16 %v213, %v212
    %v221 = vpack.c.bf16 %v215, %v214
    %v222 = vpack.c.bf16 %v217, %v216
    %v223 = vpack.c.bf16 %v219, %v218
    %v224 = vld [vmem:[#allocation2] sm:$0xf]
    %v225 = vld [vmem:[#allocation2 + $0x4] sm:$0xf]
    %v226 = vld [vmem:[#allocation2 + $0x8] sm:$0xf]
    %v227 = vld [vmem:[#allocation2 + $0xc] sm:$0xf]
    %v228 = vld [vmem:[#allocation2 + $0x10] sm:$0xf]
    %v229 = vld [vmem:[#allocation2 + $0x14] sm:$0xf]
    %v230 = vld [vmem:[#allocation2 + $0x18] sm:$0xf]
    %v231 = vld [vmem:[#allocation2 + $0x1c] sm:$0xf]
    %v232 = vld [vmem:[#allocation2 + $0x20] sm:$0xf]
    %v233 = vld [vmem:[#allocation2 + $0x24] sm:$0xf]
    %v234 = vld [vmem:[#allocation2 + $0x28] sm:$0xf]
    %v235 = vld [vmem:[#allocation2 + $0x2c] sm:$0xf]
    %v236 = vld [vmem:[#allocation2 + $0x30] sm:$0xf]
    %v237 = vld [vmem:[#allocation2 + $0x34] sm:$0xf]
    %v238 = vld [vmem:[#allocation2 + $0x38] sm:$0xf]
    %v239 = vld [vmem:[#allocation2 + $0x3c] sm:$0xf]
    %v240 = vld [vmem:[%s6] sm:$0x1]
    %v242 = vperm.slane %v240, 0
    %v260 = vunpack.c.l.b16 %v224
    %v261 = vunpack.c.l.b16 %v225
    %v262 = vunpack.c.l.b16 %v226
    %v263 = vunpack.c.l.b16 %v227
    %v264 = vunpack.c.l.b16 %v228
    %v265 = vunpack.c.l.b16 %v229
    %v266 = vunpack.c.l.b16 %v230
    %v267 = vunpack.c.l.b16 %v231
    %v268 = vunpack.c.l.b16 %v232
    %v269 = vunpack.c.l.b16 %v233
    %v270 = vunpack.c.l.b16 %v234
    %v271 = vunpack.c.l.b16 %v235
    %v272 = vunpack.c.l.b16 %v236
    %v273 = vunpack.c.l.b16 %v237
    %v274 = vunpack.c.l.b16 %v238
    %v275 = vunpack.c.l.b16 %v239
    %v276 = vpack.c.b16 %v261, %v260
    %v277 = vpack.c.b16 %v263, %v262
    %v278 = vpack.c.b16 %v265, %v264
    %v279 = vpack.c.b16 %v267, %v266
    %v280 = vpack.c.b16 %v269, %v268
    %v281 = vpack.c.b16 %v271, %v270
    %v282 = vpack.c.b16 %v273, %v272
    %v283 = vpack.c.b16 %v275, %v274
    %292 = vmatpush.bf16.msra.mxu0 %v283
    %293 = vmatpush.bf16.msra.mxu0 %v282
    %294 = vmatpush.bf16.msra.mxu0 %v281
    %295 = vmatpush.bf16.msra.mxu0 %v280
    %296 = vmatpush.bf16.msra.mxu0 %v279
    %297 = vmatpush.bf16.msra.mxu0 %v278
    %298 = vmatpush.bf16.msra.mxu0 %v277
    %299 = vmatpush.bf16.msra.mxu0 %v276
    %300 = vmatmul.bf16.gmra.mxu0 %v220
    %v301 = vpop.f32.mrf.mxu0
    %v302 = vadd.f32 %v242, %v301
    %v303 = vpop.f32.mrf.mxu0
    %v304 = vadd.f32 %v242, %v303
    %305 = vmatmul.bf16.gmra.mxu0 %v221
    %v306 = vpop.f32.mrf.mxu0
    %v307 = vadd.f32 %v242, %v306
    %v308 = vpop.f32.mrf.mxu0
    %v309 = vadd.f32 %v242, %v308
    %310 = vmatmul.bf16.gmra.mxu0 %v222
    %v311 = vpop.f32.mrf.mxu0
    %v312 = vadd.f32 %v242, %v311
    %v313 = vpop.f32.mrf.mxu0
    %v314 = vadd.f32 %v242, %v313
    %315 = vmatmul.bf16.gmra.mxu0 %v223
    %v316 = vpop.f32.mrf.mxu0
    %v317 = vadd.f32 %v242, %v316
    %v318 = vpop.f32.mrf.mxu0
    %v319 = vadd.f32 %v242, %v318
    %320 = vdwg.mxu0
    %v321 = vmax.f32 %v302, 0.0
    %v322 = vmax.f32 %v304, 0.0
    %v323 = vmax.f32 %v307, 0.0
    %v324 = vmax.f32 %v309, 0.0
    %v325 = vmax.f32 %v312, 0.0
    %v326 = vmax.f32 %v314, 0.0
    %v327 = vmax.f32 %v317, 0.0
    %v328 = vmax.f32 %v319, 0.0
    %v329 = vlaneseq
    %v330 = vand.u32 %v329, 127
    %v331 = vlaneseq
    %v332 = vshrl.u32 %v331, 7
    %v333 = vadd.s32 %v332, 8
    %v334 = vadd.s32 %v332, 16
    %v335 = vadd.s32 %v332, 24
    %v336 = vadd.s32 %v332, 32
    %v337 = vadd.s32 %v332, 40
    %v338 = vadd.s32 %v332, 48
    %v339 = vadd.s32 %v332, 56
    %vm340 = vcmp.lt.s32.totalorder %v330, 4
    %vm341 = vcmp.lt.s32.totalorder %v332, 64
    %vm342 = vcmp.lt.s32.totalorder %v333, 64
    %vm343 = vcmp.lt.s32.totalorder %v334, 64
    %vm344 = vcmp.lt.s32.totalorder %v335, 64
    %vm345 = vcmp.lt.s32.totalorder %v336, 64
    %vm346 = vcmp.lt.s32.totalorder %v337, 64
    %vm347 = vcmp.lt.s32.totalorder %v338, 64
    %vm348 = vcmp.lt.s32.totalorder %v339, 64
    %vm349 = vmand %vm340, %vm341
    %vm350 = vmand %vm340, %vm342
    %vm351 = vmand %vm340, %vm343
    %vm352 = vmand %vm340, %vm344
    %vm353 = vmand %vm340, %vm345
    %vm354 = vmand %vm340, %vm346
    %vm355 = vmand %vm340, %vm347
    %vm356 = vmand %vm340, %vm348
    %v357 = vsel %vm349, %v321, -inf
    %v358 = vsel %vm350, %v322, -inf
    %v359 = vsel %vm351, %v323, -inf
    %v360 = vsel %vm352, %v324, -inf
    %v361 = vsel %vm353, %v325, -inf
    %v362 = vsel %vm354, %v326, -inf
    %v363 = vsel %vm355, %v327, -inf
    %v364 = vsel %vm356, %v328, -inf
    %v365 = vmax.f32 %v357, %v361
    %v366 = vmax.f32 %v358, %v362
    %v367 = vmax.f32 %v359, %v363
    %v368 = vmax.f32 %v360, %v364
    %v369 = vmax.f32 %v365, %v366
    %v370 = vmax.f32 %v367, %v368
    %v371 = vmax.f32 %v369, %v370
    %372 = vmax.xlane.f32.xlu0 %v371
    %v373 = vpop.xlane.xlu0 %372
    %v374 = vrot.slane %v373, 4
    %v375 = vmax.f32 %v373, %v374
    %v376 = vrot.slane %v375, 2
    %v377 = vmax.f32 %v375, %v376
    %v378 = vrot.slane %v377, 1
    %v379 = vmax.f32 %v377, %v378
    %s380 = vtos %v379
    %vm381 = vcmp.eq.s32.totalorder %v330, 4
    %v382 = vsel %vm381, %v321, 0.0
    %v383 = vsel %vm381, %v322, 0.0
    %v384 = vsel %vm381, %v323, 0.0
    %v385 = vsel %vm381, %v324, 0.0
    %v386 = vsel %vm381, %v325, 0.0
    %v387 = vsel %vm381, %v326, 0.0
    %v388 = vsel %vm381, %v327, 0.0
    %v389 = vsel %vm381, %v328, 0.0
    %390 = vadd.xlane.f32.xlu0 %v382
    %v391 = vpop.xlane.xlu0 %390
    %392 = vadd.xlane.f32.xlu0 %v383
    %v393 = vpop.xlane.xlu0 %392
    %394 = vadd.xlane.f32.xlu0 %v384
    %v395 = vpop.xlane.xlu0 %394
    %396 = vadd.xlane.f32.xlu0 %v385
    %v397 = vpop.xlane.xlu0 %396
    %398 = vadd.xlane.f32.xlu0 %v386
    %v399 = vpop.xlane.xlu0 %398
    %400 = vadd.xlane.f32.xlu0 %v387
    %v401 = vpop.xlane.xlu0 %400
    %402 = vadd.xlane.f32.xlu0 %v388
    %v403 = vpop.xlane.xlu0 %402
    %404 = vadd.xlane.f32.xlu0 %v389
    %v405 = vpop.xlane.xlu0 %404
    %v406 = vstv %s380
    %v407 = vsub.f32 %v321, %v406
    %v408 = vsub.f32 %v322, %v406
    %v409 = vsub.f32 %v323, %v406
    %v410 = vsub.f32 %v324, %v406
    %v411 = vsub.f32 %v325, %v406
    %v412 = vsub.f32 %v326, %v406
    %v413 = vsub.f32 %v327, %v406
    %v414 = vsub.f32 %v328, %v406
    %v415 = vadd.f32 %v407, %v391
    %v416 = vadd.f32 %v408, %v393
    %v417 = vadd.f32 %v409, %v395
    %v418 = vadd.f32 %v410, %v397
    %v419 = vadd.f32 %v411, %v399
    %v420 = vadd.f32 %v412, %v401
    %v421 = vadd.f32 %v413, %v403
    %v422 = vadd.f32 %v414, %v405
    %423 = vst [vmem:[%s7] sm:$0xff] %v415
    %424 = vst [vmem:[%s7 + $0x8] sm:$0xff] %v416
    %425 = vst [vmem:[%s7 + $0x10] sm:$0xff] %v417
    %426 = vst [vmem:[%s7 + $0x18] sm:$0xff] %v418
    %427 = vst [vmem:[%s7 + $0x20] sm:$0xff] %v419
    %428 = vst [vmem:[%s7 + $0x28] sm:$0xff] %v420
    %429 = vst [vmem:[%s7 + $0x30] sm:$0xff] %v421
    %430 = vst [vmem:[%s7 + $0x38] sm:$0xff] %v422
    // Predicated region
    $region34: #{dueling_qnet_forward.1} parent=1 // pred_check
      _
    $region35: #{dueling_qnet_forward.1} parent=1 // pred_check_branch
      %432 = sbr.rel (0) target = $region37
    $region36: #{dueling_qnet_forward.1} parent=1 // pred_region
      _
    $region37: #{dueling_qnet_forward.1} parent=1 // pred_fallthru
      _
    // Predicated region
    $region38: #{dueling_qnet_forward.1} parent=1 // pred_check
      _
    $region39: #{dueling_qnet_forward.1} parent=1 // pred_check_branch
      %434 = sbr.rel (0) target = $region41
    $region40: #{dueling_qnet_forward.1} parent=1 // pred_region
      _
    $region41: #{dueling_qnet_forward.1} parent=1 // pred_fallthru
      _
    %435 = vsyncpa [#allocation3], 1

</llo_original>
